<compile_context>
chip_gen: v6e
topology: v6e:2x2x1
jax: 0.10.0
libtpu: 0.0.40
codegen_flags: <defaults>
</compile_context>

<pallas_src>
import math

import jax
import jax.numpy as jnp
from jax import lax
from jax.experimental import pallas as pl
from jax.experimental.pallas import tpu as pltpu

STATE_DIM = 16          # _state_dim
ACTION_DIM = 4          # _action_dim
HID1, HID2 = 128, 64    # fixed by the module
ACTION_STD_INIT = 0.6   # _action_std_init
LOG_2PI = math.log(2.0 * math.pi)
PACK = 8                # packed lanes: [mean(4) | value(1) | -0.5*maha(1) | pad(2)]


def _round_up(x, m):
    return (x + m - 1) // m * m


def ppo_fused_kernel(s_ref, a_ref, invvar_ref,
                     w1_ref, b1_ref, w2_ref, b2_ref, w3_ref, b3_ref,
                     out_ref):
    wdt = w1_ref.dtype                       # compute dtype for MXU operands (f32 or bf16)

    # Fused 3-layer pass (actor || critic) on the MXU; accumulate in f32.
    s = s_ref[...]                                                        # (TB, 16)
    h1 = jnp.tanh(jnp.dot(s, w1_ref[...],
                          preferred_element_type=jnp.float32) + b1_ref[...])   # (TB, 256)
    h2 = jnp.tanh(jnp.dot(h1.astype(wdt), w2_ref[...],
                          preferred_element_type=jnp.float32) + b2_ref[...])   # (TB, 128)
    o3 = jnp.dot(h2.astype(wdt), w3_ref[...],
                 preferred_element_type=jnp.float32) + b3_ref[...]             # (TB, 8)

    lane = lax.broadcasted_iota(jnp.int32, o3.shape, 1)                   # (TB, 8)
    # actor head gets final tanh (lanes < ACTION_DIM); critic value (lane 4) stays linear.
    act = jnp.where(lane < ACTION_DIM, jnp.tanh(o3), o3)

    # diagonal-Gaussian Mahalanobis term; inv_var is zero-padded beyond lane ACTION_DIM-1,
    # so the value / pad lanes contribute nothing.
    diff = a_ref[...] - act                                               # (TB, 8), f32
    maha = jnp.sum(diff * diff * invvar_ref[...], axis=-1, keepdims=True)  # (TB, 1)
    neg_half_maha = -0.5 * maha

    # single lane-packed output slab: [mean(4) | value | -0.5*maha | 0 | 0]
    out_ref[...] = jnp.where(lane == ACTION_DIM + 1, neg_half_maha,
                             jnp.where(lane <= ACTION_DIM, act, 0.0))


def fuse_params(params, compute_dtype=jnp.float32):
    """Fuse actor+critic per-layer weights into concat / block-diagonal matrices.
    Input weights are [in, out] (transposed vs. PyTorch nn.Linear)."""
    (aw1, ab1, aw2, ab2, aw3, ab3, cw1, cb1, cw2, cb2, cw3, cb3) = params
    w1 = jnp.concatenate([aw1, cw1], axis=1)                 # (16, 256)
    b1 = jnp.concatenate([ab1, cb1], axis=1)                 # (1, 256)
    w2 = jnp.zeros((2 * HID1, 2 * HID2), jnp.float32)        # (256, 128) block-diag
    w2 = w2.at[:HID1, :HID2].set(aw2).at[HID1:, HID2:].set(cw2)
    b2 = jnp.concatenate([ab2, cb2], axis=1)                 # (1, 128)
    w3 = jnp.zeros((2 * HID2, PACK), jnp.float32)            # (128, 8) block-diag + pad
    w3 = w3.at[:HID2, :ACTION_DIM].set(aw3)
    w3 = w3.at[HID2:, ACTION_DIM:ACTION_DIM + 1].set(cw3)
    b3 = jnp.zeros((1, PACK), jnp.float32)
    b3 = b3.at[:, :ACTION_DIM].set(ab3)
    b3 = b3.at[:, ACTION_DIM:ACTION_DIM + 1].set(cb3)
    # weights in compute dtype (bf16 halves weight traffic / feeds MXU bf16 rate);
    # biases stay f32 (added to the f32 accumulators).
    return (w1.astype(compute_dtype), b1, w2.astype(compute_dtype), b2,
            w3.astype(compute_dtype), b3)


def ppo_evaluate(s, a, action_var, params, *, tile_b=1024, compute_dtype=jnp.float32):
    """Returns (action_logprobs[B], state_values[B,1], dist_entropy[B], action_mean[B,A])."""
    B = s.shape[0]
    w1, b1, w2, b2, w3, b3 = fuse_params(params, compute_dtype)

    # batch tile: multiple of 8 sublanes, capped so VMEM stays small on every chip (incl. v7x).
    TB = min(int(tile_b), _round_up(B, 8))
    B_pad = _round_up(B, TB)

    s_p = jnp.zeros((B_pad, STATE_DIM), compute_dtype).at[:B].set(s.astype(compute_dtype))
    a_p = jnp.zeros((B_pad, PACK), jnp.float32).at[:B, :ACTION_DIM].set(a.astype(jnp.float32))
    inv_var = jnp.zeros((1, PACK), jnp.float32).at[0, :ACTION_DIM].set(
        1.0 / action_var.astype(jnp.float32))

    grid = (B_pad // TB,)
    out = pl.pallas_call(
        ppo_fused_kernel,
        out_shape=jax.ShapeDtypeStruct((B_pad, PACK), jnp.float32),
        grid=grid,
        in_specs=[
            pl.BlockSpec((TB, STATE_DIM), lambda i: (i, 0)),   # s   : batch-tiled
            pl.BlockSpec((TB, PACK), lambda i: (i, 0)),        # a   : batch-tiled (padded)
            pl.BlockSpec((1, PACK), lambda i: (0, 0)),         # inv_var : resident
            pl.BlockSpec(w1.shape, lambda i: (0, 0)),          # fused weights/biases: resident
            pl.BlockSpec(b1.shape, lambda i: (0, 0)),
            pl.BlockSpec(w2.shape, lambda i: (0, 0)),
            pl.BlockSpec(b2.shape, lambda i: (0, 0)),
            pl.BlockSpec(w3.shape, lambda i: (0, 0)),
            pl.BlockSpec(b3.shape, lambda i: (0, 0)),
        ],
        out_specs=pl.BlockSpec((TB, PACK), lambda i: (i, 0)),
        compiler_params=pltpu.CompilerParams(
            dimension_semantics=("parallel",),                 # 2 TCs on v7x can split batch
        ),
    )(s_p, a_p, inv_var, w1, b1, w2, b2, w3, b3)

    # constants that depend only on action_var (computed once in the wrapper, not per tile)
    log_var = jnp.log(action_var.astype(jnp.float32))
    sum_log_var = jnp.sum(log_var)
    logp_const = -0.5 * sum_log_var - 0.5 * ACTION_DIM * LOG_2PI
    ent_scalar = 0.5 * ACTION_DIM * (1.0 + LOG_2PI) + 0.5 * sum_log_var

    mean = out[:B, :ACTION_DIM]
    val = out[:B, ACTION_DIM:ACTION_DIM + 1]
    logp = out[:B, ACTION_DIM + 1] + logp_const
    ent = jnp.broadcast_to(ent_scalar, (B,)).astype(jnp.float32)
    return logp, val, ent, mean


def init_params(key):
    """Deterministic init mirroring nn.Linear default U(-1/sqrt(fan_in), 1/sqrt(fan_in)).
    Weights stored as [in, out] (transposed vs. PyTorch)."""
    dims_actor = [(STATE_DIM, HID1), (HID1, HID2), (HID2, ACTION_DIM)]
    dims_critic = [(STATE_DIM, HID1), (HID1, HID2), (HID2, 1)]
    params = []
    for (fan_in, fan_out) in dims_actor + dims_critic:
        key, kw, kb = jax.random.split(key, 3)
        bound = 1.0 / math.sqrt(fan_in)
        w = jax.random.uniform(kw, (fan_in, fan_out), jnp.float32, -bound, bound)
        b = jax.random.uniform(kb, (1, fan_out), jnp.float32, -bound, bound)
        params += [w, b]
    return tuple(params)


def reference_evaluate(s, a, action_var, params):
    (aw1, ab1, aw2, ab2, aw3, ab3, cw1, cb1, cw2, cb2, cw3, cb3) = params
    mean = jnp.tanh(jnp.tanh(jnp.tanh(s @ aw1 + ab1) @ aw2 + ab2) @ aw3 + ab3)
    val = jnp.tanh(jnp.tanh(s @ cw1 + cb1) @ cw2 + cb2) @ cw3 + cb3
    var = action_var.reshape(1, ACTION_DIM)
    k = float(ACTION_DIM)
    diff = a - mean
    logp = (-0.5 * jnp.sum(diff * diff / var, axis=-1)
            - 0.5 * jnp.sum(jnp.log(var))
            - 0.5 * k * LOG_2PI)
    ent = 0.5 * k * (1.0 + LOG_2PI) + 0.5 * jnp.sum(jnp.log(var))
    ent = jnp.full((s.shape[0],), ent, jnp.float32)
    return logp, val, ent, mean


if __name__ == "__main__":
    key = jax.random.PRNGKey(0)
    k_params, k_s, k_a = jax.random.split(key, 3)

    params = init_params(k_params)
    action_var = jnp.full((ACTION_DIM,), ACTION_STD_INIT * ACTION_STD_INIT, jnp.float32)

    B = 8
    s = jax.random.normal(k_s, (B, STATE_DIM), jnp.float32)
    a = jax.random.normal(k_a, (B, ACTION_DIM), jnp.float32)

    r_logp, r_val, r_ent, r_mean = reference_evaluate(s, a, action_var, params)

    # f32 path: exact semantics check
    logp, val, ent, mean = ppo_evaluate(s, a, action_var, params,
                                        compute_dtype=jnp.float32)
    jax.block_until_ready((logp, val, ent, mean))
    assert jnp.allclose(logp, r_logp, atol=1e-4, rtol=1e-4)
    assert jnp.allclose(val, r_val, atol=1e-4, rtol=1e-4)
    assert jnp.allclose(ent, r_ent, atol=1e-4, rtol=1e-4)
    assert jnp.allclose(mean, r_mean, atol=1e-4, rtol=1e-4)

    # bf16 MXU path (v5e/v6e/v7x perf path): loose tolerance vs f32 reference
    logp_b, val_b, ent_b, mean_b = ppo_evaluate(s, a, action_var, params,
                                                compute_dtype=jnp.bfloat16)
    jax.block_until_ready((logp_b, val_b, ent_b, mean_b))
    assert jnp.allclose(logp_b, r_logp, atol=1e-1, rtol=1e-1)
    assert jnp.allclose(val_b, r_val, atol=1e-1, rtol=1e-1)
    assert jnp.allclose(ent_b, r_ent, atol=1e-4, rtol=1e-4)
    assert jnp.allclose(mean_b, r_mean, atol=1e-1, rtol=1e-1)

    print("KERNEL_OK")
</pallas_src>

<mosaic_0001>
module attributes {stable_mosaic.version = 11 : i64} {
  func.func @ppo_fused_kernel(%arg0: i32, %arg1: memref<8x16xf32, #tpu.memory_space<vmem>>, %arg2: memref<8x8xf32, #tpu.memory_space<vmem>>, %arg3: memref<1x8xf32, #tpu.memory_space<vmem>>, %arg4: memref<16x256xf32, #tpu.memory_space<vmem>>, %arg5: memref<1x256xf32, #tpu.memory_space<vmem>>, %arg6: memref<256x128xf32, #tpu.memory_space<vmem>>, %arg7: memref<1x128xf32, #tpu.memory_space<vmem>>, %arg8: memref<128x8xf32, #tpu.memory_space<vmem>>, %arg9: memref<1x8xf32, #tpu.memory_space<vmem>>, %arg10: memref<8x8xf32, #tpu.memory_space<vmem>>) attributes {dimension_semantics = [#tpu.dimension_semantics<parallel>], iteration_bounds = array<i64: 1>, scalar_prefetch = 0 : i64, scratch_operands = 0 : i64, tpu.core_type = #tpu.core_type<tc>, window_params = [{transform_indices = @transform_0, window_bounds = array<i64: 8, 16>}, {transform_indices = @transform_1, window_bounds = array<i64: 8, 8>}, {pipeline_mode = #tpu.pipeline_mode<synchronous>, transform_indices = @transform_2, window_bounds = array<i64: 1, 8>}, {pipeline_mode = #tpu.pipeline_mode<synchronous>, transform_indices = @transform_3, window_bounds = array<i64: 16, 256>}, {pipeline_mode = #tpu.pipeline_mode<synchronous>, transform_indices = @transform_4, window_bounds = array<i64: 1, 256>}, {pipeline_mode = #tpu.pipeline_mode<synchronous>, transform_indices = @transform_5, window_bounds = array<i64: 256, 128>}, {pipeline_mode = #tpu.pipeline_mode<synchronous>, transform_indices = @transform_6, window_bounds = array<i64: 1, 128>}, {pipeline_mode = #tpu.pipeline_mode<synchronous>, transform_indices = @transform_7, window_bounds = array<i64: 128, 8>}, {pipeline_mode = #tpu.pipeline_mode<synchronous>, transform_indices = @transform_8, window_bounds = array<i64: 1, 8>}, {transform_indices = @transform_9, window_bounds = array<i64: 8, 8>}]} {
    %c0 = arith.constant 0 : index
    %c0_0 = arith.constant 0 : index
    %0 = vector.load %arg1[%c0, %c0_0] : memref<8x16xf32, #tpu.memory_space<vmem>>, vector<8x16xf32>
    %c0_1 = arith.constant 0 : index
    %c0_2 = arith.constant 0 : index
    %1 = vector.load %arg4[%c0_1, %c0_2] : memref<16x256xf32, #tpu.memory_space<vmem>>, vector<16x256xf32>
    %cst = arith.constant dense<0.000000e+00> : vector<8x256xf32>
    %2 = tpu.matmul %0, %1, %cst {dimension_numbers = #tpu.dot_dimension_numbers<[1], [0], [0], [1], [0, 0, 1, 1], [], []>} : vector<8x16xf32>, vector<16x256xf32>, vector<8x256xf32> -> vector<8x256xf32>
    %c0_3 = arith.constant 0 : index
    %c0_4 = arith.constant 0 : index
    %3 = vector.load %arg5[%c0_3, %c0_4] : memref<1x256xf32, #tpu.memory_space<vmem>>, vector<1x256xf32>
    %4 = vector.broadcast %3 : vector<1x256xf32> to vector<8x256xf32>
    %5 = arith.addf %2, %4 : vector<8x256xf32>
    %6 = math.tanh %5 : vector<8x256xf32>
    %c0_5 = arith.constant 0 : index
    %c0_6 = arith.constant 0 : index
    %7 = vector.load %arg6[%c0_5, %c0_6] : memref<256x128xf32, #tpu.memory_space<vmem>>, vector<256x128xf32>
    %cst_7 = arith.constant dense<0.000000e+00> : vector<8x128xf32>
    %8 = tpu.matmul %6, %7, %cst_7 {dimension_numbers = #tpu.dot_dimension_numbers<[1], [0], [0], [1], [0, 0, 1, 1], [], []>} : vector<8x256xf32>, vector<256x128xf32>, vector<8x128xf32> -> vector<8x128xf32>
    %c0_8 = arith.constant 0 : index
    %c0_9 = arith.constant 0 : index
    %9 = vector.load %arg7[%c0_8, %c0_9] : memref<1x128xf32, #tpu.memory_space<vmem>>, vector<1x128xf32>
    %10 = vector.broadcast %9 : vector<1x128xf32> to vector<8x128xf32>
    %11 = arith.addf %8, %10 : vector<8x128xf32>
    %12 = math.tanh %11 : vector<8x128xf32>
    %c0_10 = arith.constant 0 : index
    %c0_11 = arith.constant 0 : index
    %13 = vector.load %arg8[%c0_10, %c0_11] : memref<128x8xf32, #tpu.memory_space<vmem>>, vector<128x8xf32>
    %cst_12 = arith.constant dense<0.000000e+00> : vector<8x8xf32>
    %14 = tpu.matmul %12, %13, %cst_12 {dimension_numbers = #tpu.dot_dimension_numbers<[1], [0], [0], [1], [0, 0, 1, 1], [], []>} : vector<8x128xf32>, vector<128x8xf32>, vector<8x8xf32> -> vector<8x8xf32>
    %c0_13 = arith.constant 0 : index
    %c0_14 = arith.constant 0 : index
    %15 = vector.load %arg9[%c0_13, %c0_14] : memref<1x8xf32, #tpu.memory_space<vmem>>, vector<1x8xf32>
    %16 = vector.broadcast %15 : vector<1x8xf32> to vector<8x8xf32>
    %17 = arith.addf %14, %16 : vector<8x8xf32>
    %18 = tpu.iota {dimensions = array<i32: 1>} : vector<8x8xi32>
    %c4_i32 = arith.constant 4 : i32
    %19 = vector.broadcast %c4_i32 : i32 to vector<8x8xi32>
    %20 = arith.cmpi slt, %18, %19 : vector<8x8xi32>
    %21 = math.tanh %17 : vector<8x8xf32>
    %22 = arith.select %20, %21, %17 : vector<8x8xi1>, vector<8x8xf32>
    %c0_15 = arith.constant 0 : index
    %c0_16 = arith.constant 0 : index
    %23 = vector.load %arg2[%c0_15, %c0_16] : memref<8x8xf32, #tpu.memory_space<vmem>>, vector<8x8xf32>
    %24 = arith.subf %23, %22 : vector<8x8xf32>
    %25 = arith.mulf %24, %24 : vector<8x8xf32>
    %c0_17 = arith.constant 0 : index
    %c0_18 = arith.constant 0 : index
    %26 = vector.load %arg3[%c0_17, %c0_18] : memref<1x8xf32, #tpu.memory_space<vmem>>, vector<1x8xf32>
    %27 = vector.broadcast %26 : vector<1x8xf32> to vector<8x8xf32>
    %28 = arith.mulf %25, %27 : vector<8x8xf32>
    %cst_19 = arith.constant dense<0.000000e+00> : vector<8xf32>
    %29 = vector.multi_reduction <add>, %28, %cst_19 [1] : vector<8x8xf32> to vector<8xf32>
    %30 = vector.shape_cast %29 : vector<8xf32> to vector<8x1xf32>
    %cst_20 = arith.constant -5.000000e-01 : f32
    %31 = vector.broadcast %cst_20 : f32 to vector<8x1xf32>
    %32 = arith.mulf %31, %30 : vector<8x1xf32>
    %c5_i32 = arith.constant 5 : i32
    %33 = vector.broadcast %c5_i32 : i32 to vector<8x8xi32>
    %34 = arith.cmpi eq, %18, %33 : vector<8x8xi32>
    %c4_i32_21 = arith.constant 4 : i32
    %35 = vector.broadcast %c4_i32_21 : i32 to vector<8x8xi32>
    %36 = arith.cmpi sle, %18, %35 : vector<8x8xi32>
    %cst_22 = arith.constant 0.000000e+00 : f32
    %37 = vector.broadcast %cst_22 : f32 to vector<8x8xf32>
    %38 = arith.select %36, %22, %37 : vector<8x8xi1>, vector<8x8xf32>
    %39 = vector.shape_cast %32 : vector<8x1xf32> to vector<8x1xf32>
    %40 = vector.broadcast %39 : vector<8x1xf32> to vector<8x8xf32>
    %41 = arith.select %34, %40, %38 : vector<8x8xi1>, vector<8x8xf32>
    %c0_23 = arith.constant 0 : index
    %c0_24 = arith.constant 0 : index
    %42 = vector.load %arg10[%c0_23, %c0_24] : memref<8x8xf32, #tpu.memory_space<vmem>>, vector<8x8xf32>
    tpu.vector_store %arg10[%c0_23, %c0_24], %41 {strides = array<i32>} : memref<8x8xf32, #tpu.memory_space<vmem>>, vector<8x8xf32>,
    return
  }
  func.func @transform_0(%arg0: i32) -> (i32, i32) {
    %c0_i32 = arith.constant 0 : i32
    %c0_i32_0 = arith.constant 0 : i32
    return %arg0, %c0_i32 : i32, i32
  }
  func.func @transform_1(%arg0: i32) -> (i32, i32) {
    %c0_i32 = arith.constant 0 : i32
    %c0_i32_0 = arith.constant 0 : i32
    return %arg0, %c0_i32 : i32, i32
  }
  func.func @transform_2(%arg0: i32) -> (i32, i32) {
    %c0_i32 = arith.constant 0 : i32
    %c0_i32_0 = arith.constant 0 : i32
    %c0_i32_1 = arith.constant 0 : i32
    return %c0_i32, %c0_i32_0 : i32, i32
  }
  func.func @transform_3(%arg0: i32) -> (i32, i32) {
    %c0_i32 = arith.constant 0 : i32
    %c0_i32_0 = arith.constant 0 : i32
    %c0_i32_1 = arith.constant 0 : i32
    return %c0_i32, %c0_i32_0 : i32, i32
  }
  func.func @transform_4(%arg0: i32) -> (i32, i32) {
    %c0_i32 = arith.constant 0 : i32
    %c0_i32_0 = arith.constant 0 : i32
    %c0_i32_1 = arith.constant 0 : i32
    return %c0_i32, %c0_i32_0 : i32, i32
  }
  func.func @transform_5(%arg0: i32) -> (i32, i32) {
    %c0_i32 = arith.constant 0 : i32
    %c0_i32_0 = arith.constant 0 : i32
    %c0_i32_1 = arith.constant 0 : i32
    return %c0_i32, %c0_i32_0 : i32, i32
  }
  func.func @transform_6(%arg0: i32) -> (i32, i32) {
    %c0_i32 = arith.constant 0 : i32
    %c0_i32_0 = arith.constant 0 : i32
    %c0_i32_1 = arith.constant 0 : i32
    return %c0_i32, %c0_i32_0 : i32, i32
  }
  func.func @transform_7(%arg0: i32) -> (i32, i32) {
    %c0_i32 = arith.constant 0 : i32
    %c0_i32_0 = arith.constant 0 : i32
    %c0_i32_1 = arith.constant 0 : i32
    return %c0_i32, %c0_i32_0 : i32, i32
  }
  func.func @transform_8(%arg0: i32) -> (i32, i32) {
    %c0_i32 = arith.constant 0 : i32
    %c0_i32_0 = arith.constant 0 : i32
    %c0_i32_1 = arith.constant 0 : i32
    return %c0_i32, %c0_i32_0 : i32, i32
  }
  func.func @transform_9(%arg0: i32) -> (i32, i32) {
    %c0_i32 = arith.constant 0 : i32
    %c0_i32_0 = arith.constant 0 : i32
    return %arg0, %c0_i32 : i32, i32
  }
}

</mosaic_0001>

<llo_original>
// kernel: tpu_custom_call.1
$region0: #{tpu_custom_call.1}
  #allocation0 [shape = 'u32[]', space=smem, size = 0x4, offset = 0x4, fixed_abs, tag = 'smem constant byte address 0x4 - core index']
  #allocation1 [shape = 'u32[144,128]{1,0:T(1,128)}', space=vmem, size = 0x12000, scoped, tag = 'internal scratch']
  %s0 = inlined_call_operand.vmem [shape: f32[8,16], index: 0, kind: input, shape index: {}]
  %s1 = inlined_call_operand.vmem [shape: f32[8,8], index: 1, kind: input, shape index: {}]
  %s2 = inlined_call_operand.vmem [shape: f32[1,8], index: 2, kind: input, shape index: {}]
  %s3 = inlined_call_operand.vmem [shape: f32[16,256], index: 3, kind: input, shape index: {}]
  %s4 = inlined_call_operand.vmem [shape: f32[1,256], index: 4, kind: input, shape index: {}]
  %s5 = inlined_call_operand.hbm [shape: f32[256,128], index: 5, kind: input, shape index: {}]
  %s6 = inlined_call_operand.vmem [shape: f32[1,128], index: 6, kind: input, shape index: {}]
  %s7 = inlined_call_operand.vmem [shape: f32[128,8], index: 7, kind: input, shape index: {}]
  %s8 = inlined_call_operand.vmem [shape: f32[1,8], index: 8, kind: input, shape index: {}]
  %s9 = inlined_call_operand.hbm [shape: f32[8,8], index: 9, kind: output, shape index: {}]
  %s10 = sld [smem:[#allocation0]]
  $region50: #{tpu_custom_call.1} parent=0
    _
  %s12 = ssub.s32 1, %s10
  %s13 = scalar_select 0, %s12, %s10
  $region1: #{tpu_custom_call.1} parent=0
    #allocation2 [shape = 'u8[131072]{0}', space=vmem, size = 0x20000, scoped, tag = 'input window, operand 5, single buffered']
    #allocation3 [shape = 's32[1]{0}', space=sflag, size = 0x4, scoped, tag = 'scoped memory for tpu_custom_call.1']
    #allocation4 [shape = 's32[1]{0}', space=sflag, size = 0x4, scoped, tag = 'scoped memory for tpu_custom_call.1']
    #allocation5 [shape = 'u8[4096]{0}', space=vmem, size = 0x1000, scoped, tag = 'output window, operand 0, single buffered']
    %14 = vsyncpa [#allocation3], 0
    %15 = vsyncpa [#allocation4], 0
    // Predicated region
    $region2: #{tpu_custom_call.1} parent=1 // pred_check
      _
    $region3: #{tpu_custom_call.1} parent=1 // pred_check_branch
      %17 = sbr.rel (0) target = $region5
    $region4: #{tpu_custom_call.1} parent=1 // pred_region
      _
    $region5: #{tpu_custom_call.1} parent=1 // pred_fallthru
      _
    // Predicated region
    $region6: #{tpu_custom_call.1} parent=1 // pred_check
      _
    $region7: #{tpu_custom_call.1} parent=1 // pred_check_branch
      %19 = sbr.rel (0) target = $region9
    $region8: #{tpu_custom_call.1} parent=1 // pred_region
      _
    $region9: #{tpu_custom_call.1} parent=1 // pred_fallthru
      _
    // Predicated region
    $region10: #{tpu_custom_call.1} parent=1 // pred_check
      _
    $region11: #{tpu_custom_call.1} parent=1 // pred_check_branch
      %21 = sbr.rel (0) target = $region13
    $region12: #{tpu_custom_call.1} parent=1 // pred_region
      _
    $region13: #{tpu_custom_call.1} parent=1 // pred_fallthru
      _
    // Predicated region
    $region14: #{tpu_custom_call.1} parent=1 // pred_check
      _
    $region15: #{tpu_custom_call.1} parent=1 // pred_check_branch
      %23 = sbr.rel (0) target = $region17
    $region16: #{tpu_custom_call.1} parent=1 // pred_region
      _
    $region17: #{tpu_custom_call.1} parent=1 // pred_fallthru
      _
    // Predicated region
    $region18: #{tpu_custom_call.1} parent=1 // pred_check
      _
    $region19: #{tpu_custom_call.1} parent=1 // pred_check_branch
      %25 = sbr.rel (0) target = $region21
    $region20: #{tpu_custom_call.1} parent=1 // pred_region
      _
    $region21: #{tpu_custom_call.1} parent=1 // pred_fallthru
      _
    // Predicated region
    $region22: #{tpu_custom_call.1} parent=1 // pred_check
      _
    $region23: #{tpu_custom_call.1} parent=1 // pred_check_branch
      %27 = sbr.rel (0) target = $region25
    $region24: #{tpu_custom_call.1} parent=1 // pred_region
      %s29 = ssub.s32 4096, 4096
      %30 = vsyncadd [#allocation3], %s29
      %s31 = sshll.u32 [#allocation2], 4
      %s32 = int_to_ptr.vmem [resolvable:$true] %s31
      %37 = dma.hbm_to_vmem [thread:$0]  %s5, 4096, %s32, [#allocation3], 128, 128, 8
    $region25: #{tpu_custom_call.1} parent=1 // pred_fallthru
      _
    // Predicated region
    $region26: #{tpu_custom_call.1} parent=1 // pred_check
      _
    $region27: #{tpu_custom_call.1} parent=1 // pred_check_branch
      %39 = sbr.rel (0) target = $region29
    $region28: #{tpu_custom_call.1} parent=1 // pred_region
      _
    $region29: #{tpu_custom_call.1} parent=1 // pred_fallthru
      _
    // Predicated region
    $region30: #{tpu_custom_call.1} parent=1 // pred_check
      _
    $region31: #{tpu_custom_call.1} parent=1 // pred_check_branch
      %41 = sbr.rel (0) target = $region33
    $region32: #{tpu_custom_call.1} parent=1 // pred_region
      _
    $region33: #{tpu_custom_call.1} parent=1 // pred_fallthru
      _
    // Predicated region
    $region34: #{tpu_custom_call.1} parent=1 // pred_check
      _
    $region35: #{tpu_custom_call.1} parent=1 // pred_check_branch
      %43 = sbr.rel (0) target = $region37
    $region36: #{tpu_custom_call.1} parent=1 // pred_region
      _
    $region37: #{tpu_custom_call.1} parent=1 // pred_fallthru
      _
    // Predicated region
    $region38: #{tpu_custom_call.1} parent=1 // pred_check
      _
    $region39: #{tpu_custom_call.1} parent=1 // pred_check_branch
      %45 = sbr.rel (0) target = $region41
    $region40: #{tpu_custom_call.1} parent=1 // pred_region
      %46 = dma.done [#allocation3], 4096
    $region41: #{tpu_custom_call.1} parent=1 // pred_fallthru
      _
    %v47 = vld [vmem:[%s0] sm:$0xff]
    %v48 = vld [vmem:[%s3] sm:$0xff]
    %v49 = vld [vmem:[%s3 + $0x8] sm:$0xff]
    %v50 = vld [vmem:[%s3 + $0x10] sm:$0xff]
    %v51 = vld [vmem:[%s3 + $0x18] sm:$0xff]
    %v52 = vld [vmem:[%s4] sm:$0x3]
    %v54 = vlaneseq
    %v55 = vshrl.u32 %v54, 7
    %v56 = vsub.s32 0, %v55
    %v57 = vrot.slane %v52, %v56
    %v58 = vlaneseq
    %v59 = vshrl.u32 %v58, 7
    %v60 = vsub.s32 1, %v59
    %v61 = vrot.slane %v52, %v60
    %vm64 = vcmask 130048
    %v66 = vsel %vm64, %v47, 0
    %68 = vmatprep.subr.mxu0 0.0
    %69 = vmatpush1.msra.mxu0 0.0
    %70 = vmatprep.subr.mxu0 0.0
    %71 = vmatpush1.msra.mxu0 0.0
    %72 = vmatprep.subr.mxu0 0.0
    %73 = vmatpush1.msra.mxu0 0.0
    %74 = vmatprep.subr.mxu0 0.0
    %75 = vmatpush1.msra.mxu0 0.0
    %76 = vmatprep.subr.mxu0 0.0
    %77 = vmatpush1.msra.mxu0 0.0
    %78 = vmatprep.subr.mxu0 0.0
    %79 = vmatpush1.msra.mxu0 0.0
    %80 = vmatprep.subr.mxu0 0.0
    %81 = vmatpush1.msra.mxu0 0.0
    %82 = vmatprep.subr.mxu0 0.0
    %83 = vmatpush1.msra.mxu0 0.0
    %84 = vmatprep.subr.mxu0 0.0
    %85 = vmatpush1.msra.mxu0 0.0
    %86 = vmatprep.subr.mxu0 0.0
    %87 = vmatpush1.msra.mxu0 0.0
    %88 = vmatprep.subr.mxu0 0.0
    %89 = vmatpush1.msra.mxu0 0.0
    %90 = vmatprep.subr.mxu0 0.0
    %91 = vmatpush1.msra.mxu0 0.0
    %92 = vmatprep.subr.mxu0 0.0
    %93 = vmatpush1.msra.mxu0 0.0
    %94 = vmatprep.subr.mxu0 0.0
    %95 = vmatpush1.msra.mxu0 0.0
    %96 = vmatprep.subr.mxu0 %v51
    %97 = vmatpush1.msra.mxu0 %v50
    %98 = vmatprep.subr.mxu0 %v49
    %99 = vmatpush1.msra.mxu0 %v48
    %100 = vmatprep.subr.mxu0 0.0
    %101 = vmatpush2.msra.mxu0 0.0
    %102 = vmatprep.subr.mxu0 0.0
    %103 = vmatpush2.msra.mxu0 0.0
    %104 = vmatprep.subr.mxu0 0.0
    %105 = vmatpush2.msra.mxu0 0.0
    %106 = vmatprep.subr.mxu0 0.0
    %107 = vmatpush2.msra.mxu0 0.0
    %108 = vmatprep.subr.mxu0 0.0
    %109 = vmatpush2.msra.mxu0 0.0
    %110 = vmatprep.subr.mxu0 0.0
    %111 = vmatpush2.msra.mxu0 0.0
    %112 = vmatprep.subr.mxu0 0.0
    %113 = vmatpush2.msra.mxu0 0.0
    %114 = vmatprep.subr.mxu0 0.0
    %115 = vmatpush2.msra.mxu0 0.0
    %116 = vmatprep.subr.mxu0 0.0
    %117 = vmatpush2.msra.mxu0 0.0
    %118 = vmatprep.subr.mxu0 0.0
    %119 = vmatpush2.msra.mxu0 0.0
    %120 = vmatprep.subr.mxu0 0.0
    %121 = vmatpush2.msra.mxu0 0.0
    %122 = vmatprep.subr.mxu0 0.0
    %123 = vmatpush2.msra.mxu0 0.0
    %124 = vmatprep.subr.mxu0 0.0
    %125 = vmatpush2.msra.mxu0 0.0
    %126 = vmatprep.subr.mxu0 0.0
    %127 = vmatpush2.msra.mxu0 0.0
    %128 = vmatprep.subr.mxu0 0.0
    %129 = vmatpush2.msra.mxu0 0.0
    %130 = vmatprep.subr.mxu0 0.0
    %131 = vmatpush2.msra.mxu0 0.0
    %132 = vmatprep.mubr.f32.mxu0 0.0
    %133 = vmatmul.mubr.f32.gmra.mxu0 %v66
    %v134 = vpop.f32.mrf.mxu0
    %v135 = vadd.f32 %v57, %v134
    %v136 = vpop.f32.mrf.mxu0
    %v137 = vadd.f32 %v61, %v136
    %138 = vdwg.mxu0
    %v139 = vtanh.pop %v135
    %v140 = vtanh.pop %v137
    %v141 = vld [vmem:[#allocation2] sm:$0xff]
    %v142 = vld [vmem:[#allocation2 + $0x8] sm:$0xff]
    %v143 = vld [vmem:[#allocation2 + $0x10] sm:$0xff]
    %v144 = vld [vmem:[#allocation2 + $0x18] sm:$0xff]
    %v145 = vld [vmem:[#allocation2 + $0x20] sm:$0xff]
    %v146 = vld [vmem:[#allocation2 + $0x28] sm:$0xff]
    %v147 = vld [vmem:[#allocation2 + $0x30] sm:$0xff]
    %v148 = vld [vmem:[#allocation2 + $0x38] sm:$0xff]
    %v149 = vld [vmem:[#allocation2 + $0x40] sm:$0xff]
    %v150 = vld [vmem:[#allocation2 + $0x48] sm:$0xff]
    %v151 = vld [vmem:[#allocation2 + $0x50] sm:$0xff]
    %v152 = vld [vmem:[#allocation2 + $0x58] sm:$0xff]
    %v153 = vld [vmem:[#allocation2 + $0x60] sm:$0xff]
    %v154 = vld [vmem:[#allocation2 + $0x68] sm:$0xff]
    %v155 = vld [vmem:[#allocation2 + $0x70] sm:$0xff]
    %v156 = vld [vmem:[#allocation2 + $0x78] sm:$0xff]
    %v157 = vld [vmem:[#allocation2 + $0x80] sm:$0xff]
    %v158 = vld [vmem:[#allocation2 + $0x88] sm:$0xff]
    %v159 = vld [vmem:[#allocation2 + $0x90] sm:$0xff]
    %v160 = vld [vmem:[#allocation2 + $0x98] sm:$0xff]
    %v161 = vld [vmem:[#allocation2 + $0xa0] sm:$0xff]
    %v162 = vld [vmem:[#allocation2 + $0xa8] sm:$0xff]
    %v163 = vld [vmem:[#allocation2 + $0xb0] sm:$0xff]
    %v164 = vld [vmem:[#allocation2 + $0xb8] sm:$0xff]
    %v165 = vld [vmem:[#allocation2 + $0xc0] sm:$0xff]
    %v166 = vld [vmem:[#allocation2 + $0xc8] sm:$0xff]
    %v167 = vld [vmem:[#allocation2 + $0xd0] sm:$0xff]
    %v168 = vld [vmem:[#allocation2 + $0xd8] sm:$0xff]
    %v169 = vld [vmem:[#allocation2 + $0xe0] sm:$0xff]
    %v170 = vld [vmem:[#allocation2 + $0xe8] sm:$0xff]
    %v171 = vld [vmem:[#allocation2 + $0xf0] sm:$0xff]
    %v172 = vld [vmem:[#allocation2 + $0xf8] sm:$0xff]
    %v173 = vld [vmem:[%s6] sm:$0x1]
    %v175 = vlaneseq
    %v176 = vshrl.u32 %v175, 7
    %v177 = vsub.s32 0, %v176
    %v178 = vrot.slane %v173, %v177
    %180 = vmatprep.subr.mxu0 0.0
    %181 = vmatpush1.msra.mxu0 %v156
    %182 = vmatprep.subr.mxu0 0.0
    %183 = vmatpush1.msra.mxu0 %v155
    %184 = vmatprep.subr.mxu0 0.0
    %185 = vmatpush1.msra.mxu0 %v154
    %186 = vmatprep.subr.mxu0 0.0
    %187 = vmatpush1.msra.mxu0 %v153
    %188 = vmatprep.subr.mxu0 0.0
    %189 = vmatpush1.msra.mxu0 %v152
    %190 = vmatprep.subr.mxu0 0.0
    %191 = vmatpush1.msra.mxu0 %v151
    %192 = vmatprep.subr.mxu0 0.0
    %193 = vmatpush1.msra.mxu0 %v150
    %194 = vmatprep.subr.mxu0 0.0
    %195 = vmatpush1.msra.mxu0 %v149
    %196 = vmatprep.subr.mxu0 0.0
    %197 = vmatpush1.msra.mxu0 %v148
    %198 = vmatprep.subr.mxu0 0.0
    %199 = vmatpush1.msra.mxu0 %v147
    %200 = vmatprep.subr.mxu0 0.0
    %201 = vmatpush1.msra.mxu0 %v146
    %202 = vmatprep.subr.mxu0 0.0
    %203 = vmatpush1.msra.mxu0 %v145
    %204 = vmatprep.subr.mxu0 0.0
    %205 = vmatpush1.msra.mxu0 %v144
    %206 = vmatprep.subr.mxu0 0.0
    %207 = vmatpush1.msra.mxu0 %v143
    %208 = vmatprep.subr.mxu0 0.0
    %209 = vmatpush1.msra.mxu0 %v142
    %210 = vmatprep.subr.mxu0 0.0
    %211 = vmatpush1.msra.mxu0 %v141
    %212 = vmatprep.subr.mxu0 0.0
    %213 = vmatpush2.msra.mxu0 %v172
    %214 = vmatprep.subr.mxu0 0.0
    %215 = vmatpush2.msra.mxu0 %v171
    %216 = vmatprep.subr.mxu0 0.0
    %217 = vmatpush2.msra.mxu0 %v170
    %218 = vmatprep.subr.mxu0 0.0
    %219 = vmatpush2.msra.mxu0 %v169
    %220 = vmatprep.subr.mxu0 0.0
    %221 = vmatpush2.msra.mxu0 %v168
    %222 = vmatprep.subr.mxu0 0.0
    %223 = vmatpush2.msra.mxu0 %v167
    %224 = vmatprep.subr.mxu0 0.0
    %225 = vmatpush2.msra.mxu0 %v166
    %226 = vmatprep.subr.mxu0 0.0
    %227 = vmatpush2.msra.mxu0 %v165
    %228 = vmatprep.subr.mxu0 0.0
    %229 = vmatpush2.msra.mxu0 %v164
    %230 = vmatprep.subr.mxu0 0.0
    %231 = vmatpush2.msra.mxu0 %v163
    %232 = vmatprep.subr.mxu0 0.0
    %233 = vmatpush2.msra.mxu0 %v162
    %234 = vmatprep.subr.mxu0 0.0
    %235 = vmatpush2.msra.mxu0 %v161
    %236 = vmatprep.subr.mxu0 0.0
    %237 = vmatpush2.msra.mxu0 %v160
    %238 = vmatprep.subr.mxu0 0.0
    %239 = vmatpush2.msra.mxu0 %v159
    %240 = vmatprep.subr.mxu0 0.0
    %241 = vmatpush2.msra.mxu0 %v158
    %242 = vmatprep.subr.mxu0 0.0
    %243 = vmatpush2.msra.mxu0 %v157
    %244 = vmatprep.mubr.f32.mxu0 %v140
    %245 = vmatmul.mubr.f32.gmra.mxu0 %v139
    %v246 = vpop.f32.mrf.mxu0
    %v247 = vadd.f32 %v178, %v246
    %v248 = vpop.f32.mrf.mxu0
    %249 = vdwg.mxu0
    %v250 = vtanh.pop %v247
    %v251 = vld [vmem:[%s7] sm:$0xff]
    %v252 = vld [vmem:[%s7 + $0x8] sm:$0xff]
    %v253 = vld [vmem:[%s7 + $0x10] sm:$0xff]
    %v254 = vld [vmem:[%s7 + $0x18] sm:$0xff]
    %v255 = vld [vmem:[%s7 + $0x20] sm:$0xff]
    %v256 = vld [vmem:[%s7 + $0x28] sm:$0xff]
    %v257 = vld [vmem:[%s7 + $0x30] sm:$0xff]
    %v258 = vld [vmem:[%s7 + $0x38] sm:$0xff]
    %v259 = vld [vmem:[%s7 + $0x40] sm:$0xff]
    %v260 = vld [vmem:[%s7 + $0x48] sm:$0xff]
    %v261 = vld [vmem:[%s7 + $0x50] sm:$0xff]
    %v262 = vld [vmem:[%s7 + $0x58] sm:$0xff]
    %v263 = vld [vmem:[%s7 + $0x60] sm:$0xff]
    %v264 = vld [vmem:[%s7 + $0x68] sm:$0xff]
    %v265 = vld [vmem:[%s7 + $0x70] sm:$0xff]
    %v266 = vld [vmem:[%s7 + $0x78] sm:$0xff]
    %v267 = vld [vmem:[%s8] sm:$0x1]
    %v269 = vlaneseq
    %v270 = vshrl.u32 %v269, 7
    %v271 = vsub.s32 0, %v270
    %v272 = vrot.slane %v267, %v271
    %274 = vmatprep.subr.mxu0 0.0
    %275 = vmatpush1.msra.mxu0 %v266
    %276 = vmatprep.subr.mxu0 0.0
    %277 = vmatpush1.msra.mxu0 %v265
    %278 = vmatprep.subr.mxu0 0.0
    %279 = vmatpush1.msra.mxu0 %v264
    %280 = vmatprep.subr.mxu0 0.0
    %281 = vmatpush1.msra.mxu0 %v263
    %282 = vmatprep.subr.mxu0 0.0
    %283 = vmatpush1.msra.mxu0 %v262
    %284 = vmatprep.subr.mxu0 0.0
    %285 = vmatpush1.msra.mxu0 %v261
    %286 = vmatprep.subr.mxu0 0.0
    %287 = vmatpush1.msra.mxu0 %v260
    %288 = vmatprep.subr.mxu0 0.0
    %289 = vmatpush1.msra.mxu0 %v259
    %290 = vmatprep.subr.mxu0 0.0
    %291 = vmatpush1.msra.mxu0 %v258
    %292 = vmatprep.subr.mxu0 0.0
    %293 = vmatpush1.msra.mxu0 %v257
    %294 = vmatprep.subr.mxu0 0.0
    %295 = vmatpush1.msra.mxu0 %v256
    %296 = vmatprep.subr.mxu0 0.0
    %297 = vmatpush1.msra.mxu0 %v255
    %298 = vmatprep.subr.mxu0 0.0
    %299 = vmatpush1.msra.mxu0 %v254
    %300 = vmatprep.subr.mxu0 0.0
    %301 = vmatpush1.msra.mxu0 %v253
    %302 = vmatprep.subr.mxu0 0.0
    %303 = vmatpush1.msra.mxu0 %v252
    %304 = vmatprep.subr.mxu0 0.0
    %305 = vmatpush1.msra.mxu0 %v251
    %306 = vmatprep.subr.mxu0 0.0
    %307 = vmatpush2.msra.mxu0 0.0
    %308 = vmatprep.subr.mxu0 0.0
    %309 = vmatpush2.msra.mxu0 0.0
    %310 = vmatprep.subr.mxu0 0.0
    %311 = vmatpush2.msra.mxu0 0.0
    %312 = vmatprep.subr.mxu0 0.0
    %313 = vmatpush2.msra.mxu0 0.0
    %314 = vmatprep.subr.mxu0 0.0
    %315 = vmatpush2.msra.mxu0 0.0
    %316 = vmatprep.subr.mxu0 0.0
    %317 = vmatpush2.msra.mxu0 0.0
    %318 = vmatprep.subr.mxu0 0.0
    %319 = vmatpush2.msra.mxu0 0.0
    %320 = vmatprep.subr.mxu0 0.0
    %321 = vmatpush2.msra.mxu0 0.0
    %322 = vmatprep.subr.mxu0 0.0
    %323 = vmatpush2.msra.mxu0 0.0
    %324 = vmatprep.subr.mxu0 0.0
    %325 = vmatpush2.msra.mxu0 0.0
    %326 = vmatprep.subr.mxu0 0.0
    %327 = vmatpush2.msra.mxu0 0.0
    %328 = vmatprep.subr.mxu0 0.0
    %329 = vmatpush2.msra.mxu0 0.0
    %330 = vmatprep.subr.mxu0 0.0
    %331 = vmatpush2.msra.mxu0 0.0
    %332 = vmatprep.subr.mxu0 0.0
    %333 = vmatpush2.msra.mxu0 0.0
    %334 = vmatprep.subr.mxu0 0.0
    %335 = vmatpush2.msra.mxu0 0.0
    %336 = vmatprep.subr.mxu0 0.0
    %337 = vmatpush2.msra.mxu0 0.0
    %338 = vmatprep.mubr.f32.mxu0 0.0
    %339 = vmatmul.mubr.f32.gmra.mxu0 %v250
    %v340 = vpop.f32.mrf.mxu0
    %v341 = vadd.f32 %v272, %v340
    %v342 = vpop.f32.mrf.mxu0
    %343 = vdwg.mxu0
    %v344 = vlaneseq
    %v345 = vand.u32 %v344, 127
    %vm346 = vcmp.lt.s32.totalorder %v345, 4
    %v347 = vtanh.pop %v341
    %v348 = vsel %vm346, %v347, %v341
    %v349 = vld [vmem:[%s1] sm:$0xff]
    %v350 = vsub.f32 %v349, %v348
    %v351 = vmul.f32 %v350, %v350
    %v352 = vld [vmem:[%s2] sm:$0x1]
    %v354 = vlaneseq
    %v355 = vshrl.u32 %v354, 7
    %v356 = vsub.s32 0, %v355
    %v357 = vrot.slane %v352, %v356
    %v359 = vmul.f32 %v351, %v357
    %vm360 = vcmask 64512
    %v361 = vsel %vm360, %v359, 0.0
    %362 = vadd.xlane.f32.xlu0 %v361
    %v363 = vpop.xlane.xlu0 %362
    %v364 = vmul.f32 %v363, -0.5
    %vm365 = vcmp.eq.s32.totalorder %v345, 5
    %vm366 = vcmp.le.s32.totalorder %v345, 4
    %v367 = vsel %vm366, %v348, 0.0
    %v368 = vsel %vm365, %v364, %v367
    %369 = vst.msk [vmem:[#allocation5] sm:$0xff] %vm360, %v368
    // Predicated region
    $region42: #{tpu_custom_call.1} parent=1 // pred_check
      _
    $region43: #{tpu_custom_call.1} parent=1 // pred_check_branch
      %371 = sbr.rel (0) target = $region45
    $region44: #{tpu_custom_call.1} parent=1 // pred_region
      %s373 = ssub.s32 128, 128
      %374 = vsyncadd [#allocation4], %s373
      %s376 = sshll.u32 [#allocation5], 4
      %s377 = int_to_ptr.vmem [resolvable:$true] %s376
      %379 = dma.vmem_to_hbm [thread:$0]  %s377, 128, %s9, [#allocation4]
    $region45: #{tpu_custom_call.1} parent=1 // pred_fallthru
      _
    // Predicated region
    $region46: #{tpu_custom_call.1} parent=1 // pred_check
      _
    $region47: #{tpu_custom_call.1} parent=1 // pred_check_branch
      %381 = sbr.rel (0) target = $region49
    $region48: #{tpu_custom_call.1} parent=1 // pred_region
      %382 = dma.done [#allocation4], 128
    $region49: #{tpu_custom_call.1} parent=1 // pred_fallthru
      _
    %383 = vsyncpa [#allocation3], 1
    %384 = vsyncpa [#allocation4], 1

</llo_original>
